<compile_context>
chip_gen: v6e
topology: v6e:2x2x1
jax: 0.10.0
libtpu: 0.0.40
codegen_flags: <defaults>
</compile_context>

<pallas_src>
import functools
import math

import jax
import jax.numpy as jnp
import numpy as np
from jax import lax
from jax.experimental import pallas as pl
from jax.experimental.pallas import tpu as pltpu

PAD = 6  # = max dilation among branches; one padded slab serves every tap


# ----------------------------------------------------------------------------
# Kernel: one fused block matmul for all four branches.
# ----------------------------------------------------------------------------
def _fused_aspp_kernel(w_ref, rhs_ref, out_ref):
    # (4*Cout, K) @ (K, TILE_L) on the MXU with f32 accumulation; bias is
    # already folded into the ones column of the RHS.  ReLU on the VPU, then a
    # single full-tile (unmasked) store of the (4*Cout, TILE_L) result.
    y = jnp.dot(w_ref[...], rhs_ref[...], preferred_element_type=jnp.float32)
    out_ref[...] = jnp.maximum(y, 0.0).astype(out_ref.dtype)


# ----------------------------------------------------------------------------
# Wrapper-side glue (all tiny XLA ops at these sizes).
# ----------------------------------------------------------------------------
def _im2col_taps(xpad, dilation, H, W):
    """9 dilated-conv taps as an im2col matrix (N, 9*Cin, H*W).

    Row order is tap-major / channel-minor: row = (ky*3 + kx)*Cin + ci.
    """
    N, Cin = xpad.shape[0], xpad.shape[1]
    cols = []
    for ky in range(3):
        for kx in range(3):
            h0 = PAD + (ky - 1) * dilation
            w0 = PAD + (kx - 1) * dilation
            cols.append(xpad[:, :, h0:h0 + H, w0:w0 + W].reshape(N, Cin, H * W))
    return jnp.concatenate(cols, axis=1)


def _pick_lane_tile(total_lanes):
    """Lane-tile width for the grid.

    v7x has 2 TensorCores per chip -> keep a 2-way "parallel" lane-tile axis.
    Single-TC chips (v5e/v6e) do best with one full-width step."""
    try:
        kind = jax.devices()[0].device_kind.lower()
    except Exception:
        kind = ""
    if "v7" in kind and total_lanes >= 512 and (total_lanes // 2) % 128 == 0:
        return total_lanes // 2
    return total_lanes


def _build_fused_weight(params, Cin, Cout, k_pad):
    """Pack the 4 branch weights + biases into one block-structured LHS."""
    (w0, b0), (w1, b1), (w2, b2), (w3, b3) = params
    K9 = 9 * Cin
    # OIHW -> (Cout, 9*Cin) matching the tap-major/channel-minor im2col rows.
    w1m = jnp.transpose(w1, (0, 2, 3, 1)).reshape(Cout, K9)
    w2m = jnp.transpose(w2, (0, 2, 3, 1)).reshape(Cout, K9)
    w0m = w0[:, :, 0, 0]                                   # (Cout, Cin)
    w3m = w3[:, :, 0, 0]                                   # (Cout, Cin)

    wf = jnp.zeros((4 * Cout, k_pad), jnp.float32)
    # branch 0: 1x1 conv == center tap (ky=kx=1) columns of the p3 block.
    wf = wf.at[0 * Cout:1 * Cout, 4 * Cin:5 * Cin].set(w0m)
    # branch 1: 3x3 dilation 3 -> p3 block.
    wf = wf.at[1 * Cout:2 * Cout, 0:K9].set(w1m)
    # branch 2: 3x3 dilation 6 -> p6 block.
    wf = wf.at[2 * Cout:3 * Cout, K9:2 * K9].set(w2m)
    # branch 3: GAP -> 1x1 conv (spatial broadcast commutes with the conv).
    wf = wf.at[3 * Cout:4 * Cout, 2 * K9:2 * K9 + Cin].set(w3m)
    # biases -> ones column (fold bias into the matmul).
    ones_col = 2 * K9 + Cin
    bias = jnp.concatenate([b0, b1, b2, b3]).reshape(4 * Cout)
    wf = wf.at[:, ones_col].set(bias)
    return wf


def aspp_forward(x_nchw, params, compute_dtype=jnp.bfloat16):
    """ASPP forward. x_nchw: (N, Cin, H, W) f32 -> (N, 4*Cout, H, W) f32."""
    N, Cin, H, W = x_nchw.shape
    Cout = params[0][0].shape[0]
    HW = H * W
    K9 = 9 * Cin
    k_raw = 2 * K9 + Cin + 1                 # p3 + p6 + gap + ones
    k_pad = ((k_raw + 15) // 16) * 16        # sublane-friendly for bf16/f32

    x = x_nchw.astype(jnp.float32)

    # Tap extraction / GAP / ones row (stays in NCHW, no activation transposes).
    xpad = jnp.pad(x, ((0, 0), (0, 0), (PAD, PAD), (PAD, PAD)))
    p3 = _im2col_taps(xpad, 3, H, W)                              # (N, 9Cin, HW)
    p6 = _im2col_taps(xpad, 6, H, W)                              # (N, 9Cin, HW)
    gap = jnp.mean(x, axis=(2, 3)).reshape(N, Cin, 1)             # (N, Cin, 1)
    gap_rows = jnp.broadcast_to(gap, (N, Cin, HW))
    ones_row = jnp.ones((N, 1, HW), jnp.float32)
    pad_rows = jnp.zeros((N, k_pad - k_raw, HW), jnp.float32)
    rhs = jnp.concatenate([p3, p6, gap_rows, ones_row, pad_rows], axis=1)

    # Fold batch into the lane axis: (K, N*HW), lane-dense.
    rhs = jnp.transpose(rhs, (1, 0, 2)).reshape(k_pad, N * HW)
    L = N * HW
    L_pad = ((L + 127) // 128) * 128
    if L_pad != L:
        rhs = jnp.pad(rhs, ((0, 0), (0, L_pad - L)))

    wf = _build_fused_weight(params, Cin, Cout, k_pad)

    # bf16 storage (halves HBM traffic / vreg footprint); f32 MXU accumulation.
    rhs = rhs.astype(compute_dtype)
    wf = wf.astype(compute_dtype)

    tile_l = _pick_lane_tile(L_pad)
    num_tiles = L_pad // tile_l

    # VMEM budget from the actual footprint (double-buffered blocks) + headroom.
    in_bytes = np.dtype(compute_dtype).itemsize
    block_bytes = (k_pad * tile_l + 4 * Cout * k_pad) * in_bytes \
        + 4 * Cout * tile_l * 4
    vmem_budget = int(4 * block_bytes) + (4 << 20)

    out_flat = pl.pallas_call(
        _fused_aspp_kernel,
        out_shape=jax.ShapeDtypeStruct((4 * Cout, L_pad), jnp.float32),
        grid=(num_tiles,),
        in_specs=[
            pl.BlockSpec((4 * Cout, k_pad), lambda l: (0, 0)),   # fused weights
            pl.BlockSpec((k_pad, tile_l), lambda l: (0, l)),     # fused RHS
        ],
        out_specs=pl.BlockSpec((4 * Cout, tile_l), lambda l: (0, l)),
        compiler_params=pltpu.CompilerParams(
            dimension_semantics=("parallel",),      # v7x: lane tiles across TCs
            vmem_limit_bytes=vmem_budget),
    )(wf, rhs)

    # (4*Cout, N*HW) -> (N, 4*Cout, H, W); channel order matches
    # torch.cat([b0, b1, b2, b3], dim=1).  Tiny output, free-ish glue.
    out = out_flat[:, :L].reshape(4 * Cout, N, HW)
    return jnp.transpose(out, (1, 0, 2)).reshape(N, 4 * Cout, H, W)


# ----------------------------------------------------------------------------
# Parameter init (matches the PyTorch module) and pure-JAX reference.
# ----------------------------------------------------------------------------
def init_aspp_params(key, in_channels, out_channels):
    """weight ~ N(0, sqrt(2 / (kh*kw*out_channels))), bias = 0."""
    kernel_sizes = [1, 3, 3, 1]
    params = []
    for ks in kernel_sizes:
        key, sub = jax.random.split(key)
        n = ks * ks * out_channels
        w = jax.random.normal(sub, (out_channels, in_channels, ks, ks),
                              jnp.float32) * math.sqrt(2.0 / n)
        b = jnp.zeros((out_channels,), jnp.float32)
        params.append((w, b))
    return params


def aspp_reference(x, params):
    """Pure-JAX reference (NCHW), mirrors the PyTorch forward exactly."""
    (w0, b0), (w1, b1), (w2, b2), (w3, b3) = params
    dn = ("NCHW", "OIHW", "NCHW")

    def conv(inp, w, b, d, p):
        y = lax.conv_general_dilated(inp, w, (1, 1), [(p, p), (p, p)],
                                     rhs_dilation=(d, d), dimension_numbers=dn)
        return jax.nn.relu(y + b[None, :, None, None])

    avg = jnp.mean(x, axis=(2, 3), keepdims=True)
    outs = [conv(x, w0, b0, 1, 0), conv(x, w1, b1, 3, 3), conv(x, w2, b2, 6, 6)]
    y3 = conv(avg, w3, b3, 1, 0)
    outs.append(jnp.broadcast_to(y3, outs[-1].shape))
    return jnp.concatenate(outs, axis=1)


if __name__ == "__main__":
    key = jax.random.PRNGKey(0)
    kx, kp = jax.random.split(key)
    N, Cin, Cout, H, W = 2, 4, 4, 16, 16

    x = jax.random.normal(kx, (N, Cin, H, W), jnp.float32)
    params = init_aspp_params(kp, Cin, Cout)
    ref = np.asarray(aspp_reference(x, params))

    # f32 path: tight check against the PyTorch-equivalent reference.
    fwd_f32 = jax.jit(functools.partial(aspp_forward, compute_dtype=jnp.float32))
    out_f32 = jax.block_until_ready(fwd_f32(x, params))
    assert out_f32.shape == (N, 4 * Cout, H, W), out_f32.shape
    if not np.allclose(np.asarray(out_f32), ref, rtol=1e-3, atol=1e-3):
        raise AssertionError("Pallas ASPP (f32) mismatches JAX reference")

    # bf16 path (default, per perf review): bf16 storage, f32 accumulation;
    # tolerance reflects bf16 input rounding (~2^-9 relative per element).
    fwd_bf16 = jax.jit(functools.partial(aspp_forward, compute_dtype=jnp.bfloat16))
    out_bf16 = jax.block_until_ready(fwd_bf16(x, params))
    assert out_bf16.shape == (N, 4 * Cout, H, W), out_bf16.shape
    if not np.allclose(np.asarray(out_bf16), ref, rtol=2.5e-2, atol=2.5e-2):
        raise AssertionError("Pallas ASPP (bf16) mismatches JAX reference")

    print("KERNEL_OK")
</pallas_src>

<mosaic_0001>
module attributes {stable_mosaic.version = 11 : i64} {
  func.func @_fused_aspp_kernel(%arg0: i32, %arg1: memref<16x80xf32, #tpu.memory_space<vmem>>, %arg2: memref<80x512xf32, #tpu.memory_space<vmem>>, %arg3: memref<16x512xf32, #tpu.memory_space<vmem>>) attributes {dimension_semantics = [#tpu.dimension_semantics<parallel>], iteration_bounds = array<i64: 1>, scalar_prefetch = 0 : i64, scratch_operands = 0 : i64, tpu.core_type = #tpu.core_type<tc>, window_params = [{pipeline_mode = #tpu.pipeline_mode<synchronous>, transform_indices = @transform_0, window_bounds = array<i64: 16, 80>}, {transform_indices = @transform_1, window_bounds = array<i64: 80, 512>}, {transform_indices = @transform_2, window_bounds = array<i64: 16, 512>}]} {
    %c0 = arith.constant 0 : index
    %c0_0 = arith.constant 0 : index
    %0 = vector.load %arg1[%c0, %c0_0] : memref<16x80xf32, #tpu.memory_space<vmem>>, vector<16x80xf32>
    %c0_1 = arith.constant 0 : index
    %c0_2 = arith.constant 0 : index
    %1 = vector.load %arg2[%c0_1, %c0_2] : memref<80x512xf32, #tpu.memory_space<vmem>>, vector<80x512xf32>
    %cst = arith.constant dense<0.000000e+00> : vector<16x512xf32>
    %2 = tpu.matmul %0, %1, %cst {dimension_numbers = #tpu.dot_dimension_numbers<[1], [0], [0], [1], [0, 0, 1, 1], [], []>} : vector<16x80xf32>, vector<80x512xf32>, vector<16x512xf32> -> vector<16x512xf32>
    %cst_3 = arith.constant 0.000000e+00 : f32
    %3 = vector.broadcast %cst_3 : f32 to vector<16x512xf32>
    %4 = arith.maximumf %2, %3 : vector<16x512xf32>
    %c0_4 = arith.constant 0 : index
    %c0_5 = arith.constant 0 : index
    %5 = vector.load %arg3[%c0_4, %c0_5] : memref<16x512xf32, #tpu.memory_space<vmem>>, vector<16x512xf32>
    tpu.vector_store %arg3[%c0_4, %c0_5], %4 {strides = array<i32>} : memref<16x512xf32, #tpu.memory_space<vmem>>, vector<16x512xf32>,
    return
  }
  func.func @transform_0(%arg0: i32) -> (i32, i32) {
    %c0_i32 = arith.constant 0 : i32
    %c0_i32_0 = arith.constant 0 : i32
    %c0_i32_1 = arith.constant 0 : i32
    return %c0_i32, %c0_i32_0 : i32, i32
  }
  func.func @transform_1(%arg0: i32) -> (i32, i32) {
    %c0_i32 = arith.constant 0 : i32
    %c0_i32_0 = arith.constant 0 : i32
    return %c0_i32, %arg0 : i32, i32
  }
  func.func @transform_2(%arg0: i32) -> (i32, i32) {
    %c0_i32 = arith.constant 0 : i32
    %c0_i32_0 = arith.constant 0 : i32
    return %c0_i32, %arg0 : i32, i32
  }
}

</mosaic_0001>

<llo_original>
// kernel: aspp_forward.1
$region0: #{aspp_forward.1}
  #allocation0 [shape = 'u32[]', space=smem, size = 0x4, offset = 0x4, fixed_abs, tag = 'smem constant byte address 0x4 - core index']
  #allocation1 [shape = 'u32[144,128]{1,0:T(1,128)}', space=vmem, size = 0x12000, scoped, tag = 'internal scratch']
  %s0 = inlined_call_operand.vmem [shape: f32[16,80], index: 0, kind: input, shape index: {}]
  %s1 = inlined_call_operand.vmem [shape: f32[80,512], index: 1, kind: input, shape index: {}]
  %s2 = inlined_call_operand.vmem [shape: f32[16,512], index: 2, kind: output, shape index: {}]
  %s3 = sld [smem:[#allocation0]]
  $region18: #{aspp_forward.1} parent=0
    _
  %s5 = ssub.s32 1, %s3
  %s6 = scalar_select 0, %s5, %s3
  // Predicated region
  $region2: #{aspp_forward.1} parent=0 // pred_check
    _
  $region3: #{aspp_forward.1} parent=0 // pred_check_branch
    %8 = sbr.rel (0) target = $region5
  $region4: #{aspp_forward.1} parent=0 // pred_region
    _
  $region5: #{aspp_forward.1} parent=0 // pred_fallthru
    _
  // Predicated region
  $region6: #{aspp_forward.1} parent=0 // pred_check
    _
  $region7: #{aspp_forward.1} parent=0 // pred_check_branch
    %10 = sbr.rel (0) target = $region9
  $region8: #{aspp_forward.1} parent=0 // pred_region
    _
  $region9: #{aspp_forward.1} parent=0 // pred_fallthru
    _
  %v11 = vld [vmem:[%s0] sm:$0xff]
  %v12 = vld [vmem:[%s0 + $0x8] sm:$0xff]
  %v13 = vld [vmem:[%s1] sm:$0xff]
  %v14 = vld [vmem:[%s1 + $0x8] sm:$0xff]
  %v15 = vld [vmem:[%s1 + $0x10] sm:$0xff]
  %v16 = vld [vmem:[%s1 + $0x18] sm:$0xff]
  %v17 = vld [vmem:[%s1 + $0x20] sm:$0xff]
  %v18 = vld [vmem:[%s1 + $0x28] sm:$0xff]
  %v19 = vld [vmem:[%s1 + $0x30] sm:$0xff]
  %v20 = vld [vmem:[%s1 + $0x38] sm:$0xff]
  %v21 = vld [vmem:[%s1 + $0x40] sm:$0xff]
  %v22 = vld [vmem:[%s1 + $0x48] sm:$0xff]
  %v23 = vld [vmem:[%s1 + $0x50] sm:$0xff]
  %v24 = vld [vmem:[%s1 + $0x58] sm:$0xff]
  %v25 = vld [vmem:[%s1 + $0x60] sm:$0xff]
  %v26 = vld [vmem:[%s1 + $0x68] sm:$0xff]
  %v27 = vld [vmem:[%s1 + $0x70] sm:$0xff]
  %v28 = vld [vmem:[%s1 + $0x78] sm:$0xff]
  %v29 = vld [vmem:[%s1 + $0x80] sm:$0xff]
  %v30 = vld [vmem:[%s1 + $0x88] sm:$0xff]
  %v31 = vld [vmem:[%s1 + $0x90] sm:$0xff]
  %v32 = vld [vmem:[%s1 + $0x98] sm:$0xff]
  %v33 = vld [vmem:[%s1 + $0xa0] sm:$0xff]
  %v34 = vld [vmem:[%s1 + $0xa8] sm:$0xff]
  %v35 = vld [vmem:[%s1 + $0xb0] sm:$0xff]
  %v36 = vld [vmem:[%s1 + $0xb8] sm:$0xff]
  %v37 = vld [vmem:[%s1 + $0xc0] sm:$0xff]
  %v38 = vld [vmem:[%s1 + $0xc8] sm:$0xff]
  %v39 = vld [vmem:[%s1 + $0xd0] sm:$0xff]
  %v40 = vld [vmem:[%s1 + $0xd8] sm:$0xff]
  %v41 = vld [vmem:[%s1 + $0xe0] sm:$0xff]
  %v42 = vld [vmem:[%s1 + $0xe8] sm:$0xff]
  %v43 = vld [vmem:[%s1 + $0xf0] sm:$0xff]
  %v44 = vld [vmem:[%s1 + $0xf8] sm:$0xff]
  %v45 = vld [vmem:[%s1 + $0x100] sm:$0xff]
  %v46 = vld [vmem:[%s1 + $0x108] sm:$0xff]
  %v47 = vld [vmem:[%s1 + $0x110] sm:$0xff]
  %v48 = vld [vmem:[%s1 + $0x118] sm:$0xff]
  %v49 = vld [vmem:[%s1 + $0x120] sm:$0xff]
  %v50 = vld [vmem:[%s1 + $0x128] sm:$0xff]
  %v51 = vld [vmem:[%s1 + $0x130] sm:$0xff]
  %v52 = vld [vmem:[%s1 + $0x138] sm:$0xff]
  %vm53 = vcmask 654336
  %v55 = vsel %vm53, %v11, 0
  %v58 = vsel %vm53, %v12, 0
  %60 = vmatprep.subr.mxu0 0.0
  %61 = vmatpush1.msra.mxu0 0.0
  %62 = vmatprep.subr.mxu0 0.0
  %63 = vmatpush1.msra.mxu0 0.0
  %64 = vmatprep.subr.mxu0 0.0
  %65 = vmatpush1.msra.mxu0 0.0
  %66 = vmatprep.subr.mxu0 0.0
  %67 = vmatpush1.msra.mxu0 0.0
  %68 = vmatprep.subr.mxu0 0.0
  %69 = vmatpush1.msra.mxu0 0.0
  %70 = vmatprep.subr.mxu0 0.0
  %71 = vmatpush1.msra.mxu0 0.0
  %72 = vmatprep.subr.mxu0 %v50
  %73 = vmatpush1.msra.mxu0 %v49
  %74 = vmatprep.subr.mxu0 %v46
  %75 = vmatpush1.msra.mxu0 %v45
  %76 = vmatprep.subr.mxu0 %v42
  %77 = vmatpush1.msra.mxu0 %v41
  %78 = vmatprep.subr.mxu0 %v38
  %79 = vmatpush1.msra.mxu0 %v37
  %80 = vmatprep.subr.mxu0 %v34
  %81 = vmatpush1.msra.mxu0 %v33
  %82 = vmatprep.subr.mxu0 %v30
  %83 = vmatpush1.msra.mxu0 %v29
  %84 = vmatprep.subr.mxu0 %v26
  %85 = vmatpush1.msra.mxu0 %v25
  %86 = vmatprep.subr.mxu0 %v22
  %87 = vmatpush1.msra.mxu0 %v21
  %88 = vmatprep.subr.mxu0 %v18
  %89 = vmatpush1.msra.mxu0 %v17
  %90 = vmatprep.subr.mxu0 %v14
  %91 = vmatpush1.msra.mxu0 %v13
  %92 = vmatprep.subr.mxu0 0.0
  %93 = vmatpush2.msra.mxu0 0.0
  %94 = vmatprep.subr.mxu0 0.0
  %95 = vmatpush2.msra.mxu0 0.0
  %96 = vmatprep.subr.mxu0 0.0
  %97 = vmatpush2.msra.mxu0 0.0
  %98 = vmatprep.subr.mxu0 0.0
  %99 = vmatpush2.msra.mxu0 0.0
  %100 = vmatprep.subr.mxu0 0.0
  %101 = vmatpush2.msra.mxu0 0.0
  %102 = vmatprep.subr.mxu0 0.0
  %103 = vmatpush2.msra.mxu0 0.0
  %104 = vmatprep.subr.mxu0 0.0
  %105 = vmatpush2.msra.mxu0 0.0
  %106 = vmatprep.subr.mxu0 0.0
  %107 = vmatpush2.msra.mxu0 0.0
  %108 = vmatprep.subr.mxu0 0.0
  %109 = vmatpush2.msra.mxu0 0.0
  %110 = vmatprep.subr.mxu0 0.0
  %111 = vmatpush2.msra.mxu0 0.0
  %112 = vmatprep.subr.mxu0 0.0
  %113 = vmatpush2.msra.mxu0 0.0
  %114 = vmatprep.subr.mxu0 0.0
  %115 = vmatpush2.msra.mxu0 0.0
  %116 = vmatprep.subr.mxu0 0.0
  %117 = vmatpush2.msra.mxu0 0.0
  %118 = vmatprep.subr.mxu0 0.0
  %119 = vmatpush2.msra.mxu0 0.0
  %120 = vmatprep.subr.mxu0 0.0
  %121 = vmatpush2.msra.mxu0 0.0
  %122 = vmatprep.subr.mxu0 0.0
  %123 = vmatpush2.msra.mxu0 0.0
  %124 = vmatprep.mubr.f32.mxu0 0.0
  %125 = vmatmul.mubr.f32.gmra.mxu0 %v55
  %v126 = vpop.f32.mrf.mxu0
  %v127 = vadd.f32 0.0, %v126
  %v128 = vpop.f32.mrf.mxu0
  %v129 = vadd.f32 0.0, %v128
  %130 = vmatprep.mubr.f32.mxu0 0.0
  %131 = vmatmul.mubr.f32.gmra.mxu0 %v58
  %v132 = vpop.f32.mrf.mxu0
  %v133 = vadd.f32 0.0, %v132
  %v134 = vpop.f32.mrf.mxu0
  %v135 = vadd.f32 0.0, %v134
  %136 = vdwg.mxu0
  %137 = vmatprep.subr.mxu0 0.0
  %138 = vmatpush1.msra.mxu0 0.0
  %139 = vmatprep.subr.mxu0 0.0
  %140 = vmatpush1.msra.mxu0 0.0
  %141 = vmatprep.subr.mxu0 0.0
  %142 = vmatpush1.msra.mxu0 0.0
  %143 = vmatprep.subr.mxu0 0.0
  %144 = vmatpush1.msra.mxu0 0.0
  %145 = vmatprep.subr.mxu0 0.0
  %146 = vmatpush1.msra.mxu0 0.0
  %147 = vmatprep.subr.mxu0 0.0
  %148 = vmatpush1.msra.mxu0 0.0
  %149 = vmatprep.subr.mxu0 %v52
  %150 = vmatpush1.msra.mxu0 %v51
  %151 = vmatprep.subr.mxu0 %v48
  %152 = vmatpush1.msra.mxu0 %v47
  %153 = vmatprep.subr.mxu0 %v44
  %154 = vmatpush1.msra.mxu0 %v43
  %155 = vmatprep.subr.mxu0 %v40
  %156 = vmatpush1.msra.mxu0 %v39
  %157 = vmatprep.subr.mxu0 %v36
  %158 = vmatpush1.msra.mxu0 %v35
  %159 = vmatprep.subr.mxu0 %v32
  %160 = vmatpush1.msra.mxu0 %v31
  %161 = vmatprep.subr.mxu0 %v28
  %162 = vmatpush1.msra.mxu0 %v27
  %163 = vmatprep.subr.mxu0 %v24
  %164 = vmatpush1.msra.mxu0 %v23
  %165 = vmatprep.subr.mxu0 %v20
  %166 = vmatpush1.msra.mxu0 %v19
  %167 = vmatprep.subr.mxu0 %v16
  %168 = vmatpush1.msra.mxu0 %v15
  %169 = vmatprep.subr.mxu0 0.0
  %170 = vmatpush2.msra.mxu0 0.0
  %171 = vmatprep.subr.mxu0 0.0
  %172 = vmatpush2.msra.mxu0 0.0
  %173 = vmatprep.subr.mxu0 0.0
  %174 = vmatpush2.msra.mxu0 0.0
  %175 = vmatprep.subr.mxu0 0.0
  %176 = vmatpush2.msra.mxu0 0.0
  %177 = vmatprep.subr.mxu0 0.0
  %178 = vmatpush2.msra.mxu0 0.0
  %179 = vmatprep.subr.mxu0 0.0
  %180 = vmatpush2.msra.mxu0 0.0
  %181 = vmatprep.subr.mxu0 0.0
  %182 = vmatpush2.msra.mxu0 0.0
  %183 = vmatprep.subr.mxu0 0.0
  %184 = vmatpush2.msra.mxu0 0.0
  %185 = vmatprep.subr.mxu0 0.0
  %186 = vmatpush2.msra.mxu0 0.0
  %187 = vmatprep.subr.mxu0 0.0
  %188 = vmatpush2.msra.mxu0 0.0
  %189 = vmatprep.subr.mxu0 0.0
  %190 = vmatpush2.msra.mxu0 0.0
  %191 = vmatprep.subr.mxu0 0.0
  %192 = vmatpush2.msra.mxu0 0.0
  %193 = vmatprep.subr.mxu0 0.0
  %194 = vmatpush2.msra.mxu0 0.0
  %195 = vmatprep.subr.mxu0 0.0
  %196 = vmatpush2.msra.mxu0 0.0
  %197 = vmatprep.subr.mxu0 0.0
  %198 = vmatpush2.msra.mxu0 0.0
  %199 = vmatprep.subr.mxu0 0.0
  %200 = vmatpush2.msra.mxu0 0.0
  %201 = vmatprep.mubr.f32.mxu0 0.0
  %202 = vmatmul.mubr.f32.gmra.mxu0 %v55
  %v203 = vpop.f32.mrf.mxu0
  %v204 = vadd.f32 0.0, %v203
  %v205 = vpop.f32.mrf.mxu0
  %v206 = vadd.f32 0.0, %v205
  %207 = vmatprep.mubr.f32.mxu0 0.0
  %208 = vmatmul.mubr.f32.gmra.mxu0 %v58
  %v209 = vpop.f32.mrf.mxu0
  %v210 = vadd.f32 0.0, %v209
  %v211 = vpop.f32.mrf.mxu0
  %v212 = vadd.f32 0.0, %v211
  %213 = vdwg.mxu0
  %v214 = vmax.f32 %v127, 0.0
  %v215 = vmax.f32 %v129, 0.0
  %v216 = vmax.f32 %v204, 0.0
  %v217 = vmax.f32 %v206, 0.0
  %v218 = vmax.f32 %v133, 0.0
  %v219 = vmax.f32 %v135, 0.0
  %v220 = vmax.f32 %v210, 0.0
  %v221 = vmax.f32 %v212, 0.0
  %222 = vst [vmem:[%s2] sm:$0xff] %v214
  %223 = vst [vmem:[%s2 + $0x8] sm:$0xff] %v215
  %224 = vst [vmem:[%s2 + $0x10] sm:$0xff] %v216
  %225 = vst [vmem:[%s2 + $0x18] sm:$0xff] %v217
  %226 = vst [vmem:[%s2 + $0x20] sm:$0xff] %v218
  %227 = vst [vmem:[%s2 + $0x28] sm:$0xff] %v219
  %228 = vst [vmem:[%s2 + $0x30] sm:$0xff] %v220
  %229 = vst [vmem:[%s2 + $0x38] sm:$0xff] %v221
  // Predicated region
  $region10: #{aspp_forward.1} parent=0 // pred_check
    _
  $region11: #{aspp_forward.1} parent=0 // pred_check_branch
    %231 = sbr.rel (0) target = $region13
  $region12: #{aspp_forward.1} parent=0 // pred_region
    _
  $region13: #{aspp_forward.1} parent=0 // pred_fallthru
    _
  // Predicated region
  $region14: #{aspp_forward.1} parent=0 // pred_check
    _
  $region15: #{aspp_forward.1} parent=0 // pred_check_branch
    %233 = sbr.rel (0) target = $region17
  $region16: #{aspp_forward.1} parent=0 // pred_region
    _
  $region17: #{aspp_forward.1} parent=0 // pred_fallthru
    _

</llo_original>
